<compile_context>
chip_gen: v6e
topology: v6e:2x2x1
jax: 0.10.0
libtpu: 0.0.40
codegen_flags: <defaults>
</compile_context>

<pallas_src>
import jax
import jax.numpy as jnp
from jax import lax
from jax.experimental import pallas as pl
from jax.experimental.pallas import tpu as pltpu

H_DIM = 32
EMBEDDING_DIM = 16
MAX_PEDS = 64  # TODO(synk): padded 4-D obs_traj branch (MAX_PEDS) not implemented; 3-D branch only.

SEQ_LEN = 8
NPEDS = 4

SUBLANE = 8
MAX_TILE_N = 128


def encoder_kernel(x_ref, w_big_ref, b_big_ref, w_hh_ref, out_ref):
    """Folded input projection (one matmul) + fully unrolled LSTM recurrence."""
    N = x_ref.shape[0]              # pedestrians in this tile
    S = x_ref.shape[1] // 2         # timesteps
    H = w_hh_ref.shape[0]
    G = 4 * H

    w_big = w_big_ref[...]          # (S*2, S*4H)  block-diag kron(I_S, w_emb @ w_ih)
    b_big = b_big_ref[...]          # (1, S*4H)    tiled (b_emb @ w_ih + b_ih + b_hh)
    w_hh = w_hh_ref[...]            # (H, 4H)

    # Hoisted input projection: ONE batched matmul over all pedestrians and
    # timesteps; per-step gate contributions are 128-lane-aligned slices.
    gx = jnp.dot(x_ref[...], w_big, preferred_element_type=jnp.float32) + b_big  # (N, S*4H)

    h = jnp.zeros((N, H), jnp.float32)
    c = jnp.zeros((N, H), jnp.float32)

    # Fully unrolled recurrence (S is small & static): only h @ w_hh sits on
    # the serial chain; w_hh is the same MXU RHS every step.
    for t in range(S):
        gates = gx[:, t * G:(t + 1) * G] + jnp.dot(
            h, w_hh, preferred_element_type=jnp.float32)      # (N, 4H)
        sig = jax.nn.sigmoid(gates)   # full-vreg EUP op (i, f, o live here)
        th = jnp.tanh(gates)          # full-vreg EUP op (g lives here)
        i = sig[:, 0:H]
        f = sig[:, H:2 * H]
        g = th[:, 2 * H:3 * H]
        o = sig[:, 3 * H:4 * H]
        c = f * c + i * g
        h = o * jnp.tanh(c)

    out_ref[...] = h


def encoder_forward(obs_traj, params):
    """obs_traj: (seq_len, npeds, 2) float32 -> (npeds, H_DIM) float32."""
    S, N, _ = obs_traj.shape
    H = H_DIM
    hi = lax.Precision.HIGHEST

    # --- param prep (runs once in XLA, full precision) -----------------------
    # Fold the spatial embedding into the input->gate projection.
    w_x = jnp.dot(params["w_emb"], params["w_ih"], precision=hi)                      # (2, 4H)
    b_x = jnp.dot(params["b_emb"], params["w_ih"], precision=hi) + params["b_gates"]  # (1, 4H)
    # Block-diagonal expansion so the whole (S, N) input projection is one
    # lane-aligned 2-D matmul inside the kernel.
    w_big = jnp.kron(jnp.eye(S, dtype=jnp.float32), w_x)   # (S*2, S*4H)
    b_big = jnp.tile(b_x, (1, S))                           # (1, S*4H)

    # --- pedestrian-axis padding / tiling ------------------------------------
    tile_n = min(MAX_TILE_N, ((N + SUBLANE - 1) // SUBLANE) * SUBLANE)
    n_pad = ((N + tile_n - 1) // tile_n) * tile_n
    # (S, N, 2) -> (N, S*2): row p holds [x_0, y_0, x_1, y_1, ...] for ped p.
    x_flat = jnp.transpose(obs_traj, (1, 0, 2)).reshape(N, S * 2)
    if n_pad != N:
        x_flat = jnp.pad(x_flat, ((0, n_pad - N), (0, 0)))

    grid = (n_pad // tile_n,)
    out = pl.pallas_call(
        encoder_kernel,
        out_shape=jax.ShapeDtypeStruct((n_pad, H), jnp.float32),
        grid_spec=pltpu.PrefetchScalarGridSpec(
            num_scalar_prefetch=0,
            grid=grid,
            in_specs=[
                pl.BlockSpec((tile_n, S * 2), lambda n: (n, 0)),
                pl.BlockSpec((S * 2, S * 4 * H), lambda n: (0, 0)),
                pl.BlockSpec((1, S * 4 * H), lambda n: (0, 0)),
                pl.BlockSpec((H, 4 * H), lambda n: (0, 0)),
            ],
            out_specs=pl.BlockSpec((tile_n, H), lambda n: (n, 0)),
        ),
        compiler_params=pltpu.CompilerParams(
            dimension_semantics=("parallel",)),   # shards N-tiles across TCs (v7x)
    )(x_flat, w_big, b_big, params["w_hh"])
    return out[:N]


def init_params(key):
    """Deterministic parameter init matching the PyTorch module's shapes."""
    k = jax.random.split(key, 6)
    E, H = EMBEDDING_DIM, H_DIM
    # nn.Linear(2, E): weight (E, 2), bias (E,) -- stored transposed for x @ W
    lin_bound = 1.0 / jnp.sqrt(2.0)
    w_emb = jax.random.uniform(k[0], (2, E), jnp.float32, -lin_bound, lin_bound)
    b_emb = jax.random.uniform(k[1], (1, E), jnp.float32, -lin_bound, lin_bound)
    # nn.LSTM(E, H): weight_ih (4H, E), weight_hh (4H, H), biases (4H,)
    lstm_bound = 1.0 / jnp.sqrt(float(H))
    w_ih = jax.random.uniform(k[2], (E, 4 * H), jnp.float32, -lstm_bound, lstm_bound)
    w_hh = jax.random.uniform(k[3], (H, 4 * H), jnp.float32, -lstm_bound, lstm_bound)
    b_ih = jax.random.uniform(k[4], (1, 4 * H), jnp.float32, -lstm_bound, lstm_bound)
    b_hh = jax.random.uniform(k[5], (1, 4 * H), jnp.float32, -lstm_bound, lstm_bound)
    return {"w_emb": w_emb, "b_emb": b_emb,
            "w_ih": w_ih, "w_hh": w_hh, "b_gates": b_ih + b_hh}


def encoder_reference(obs_traj, params):
    """Pure-JAX reference of the same forward pass (embed, then LSTM)."""
    S, N, _ = obs_traj.shape
    H = H_DIM
    hi = lax.Precision.HIGHEST
    e = jnp.dot(obs_traj.reshape(-1, 2), params["w_emb"], precision=hi) + params["b_emb"]
    e = e.reshape(S, N, EMBEDDING_DIM)

    def step(carry, e_t):
        h, c = carry
        gates = (jnp.dot(e_t, params["w_ih"], precision=hi)
                 + jnp.dot(h, params["w_hh"], precision=hi)
                 + params["b_gates"])
        i = jax.nn.sigmoid(gates[:, 0:H])
        f = jax.nn.sigmoid(gates[:, H:2 * H])
        g = jnp.tanh(gates[:, 2 * H:3 * H])
        o = jax.nn.sigmoid(gates[:, 3 * H:4 * H])
        c = f * c + i * g
        h = o * jnp.tanh(c)
        return (h, c), None

    (h, _), _ = lax.scan(step, (jnp.zeros((N, H)), jnp.zeros((N, H))), e)
    return h


if __name__ == "__main__":
    key = jax.random.PRNGKey(0)
    pkey, xkey = jax.random.split(key)
    params = init_params(pkey)

    # obs_traj: (seq_len=8, npeds=4, 2) relative coordinates
    obs_traj = jax.random.normal(xkey, (SEQ_LEN, NPEDS, 2), jnp.float32)

    out = encoder_forward(obs_traj, params)
    out = jax.block_until_ready(out)

    ref = encoder_reference(obs_traj, params)
    assert out.shape == (NPEDS, H_DIM)
    # Folding w_emb into w_ih reassociates the fp32 sums -> allow a small slack.
    assert jnp.allclose(out, ref, atol=1e-4, rtol=1e-4), "mismatch vs reference"

    print("KERNEL_OK")
</pallas_src>

<mosaic_0001>
module attributes {stable_mosaic.version = 11 : i64} {
  func.func @encoder_kernel(%arg0: i32, %arg1: memref<8x16xf32, #tpu.memory_space<vmem>>, %arg2: memref<16x1024xf32, #tpu.memory_space<vmem>>, %arg3: memref<1x1024xf32, #tpu.memory_space<vmem>>, %arg4: memref<32x128xf32, #tpu.memory_space<vmem>>, %arg5: memref<8x32xf32, #tpu.memory_space<vmem>>) attributes {dimension_semantics = [#tpu.dimension_semantics<parallel>], iteration_bounds = array<i64: 1>, scalar_prefetch = 0 : i64, scratch_operands = 0 : i64, tpu.core_type = #tpu.core_type<tc>, window_params = [{transform_indices = @transform_0, window_bounds = array<i64: 8, 16>}, {pipeline_mode = #tpu.pipeline_mode<synchronous>, transform_indices = @transform_1, window_bounds = array<i64: 16, 1024>}, {pipeline_mode = #tpu.pipeline_mode<synchronous>, transform_indices = @transform_2, window_bounds = array<i64: 1, 1024>}, {pipeline_mode = #tpu.pipeline_mode<synchronous>, transform_indices = @transform_3, window_bounds = array<i64: 32, 128>}, {transform_indices = @transform_4, window_bounds = array<i64: 8, 32>}]} {
    %c0 = arith.constant 0 : index
    %c0_0 = arith.constant 0 : index
    %0 = vector.load %arg2[%c0, %c0_0] : memref<16x1024xf32, #tpu.memory_space<vmem>>, vector<16x1024xf32>
    %c0_1 = arith.constant 0 : index
    %c0_2 = arith.constant 0 : index
    %1 = vector.load %arg3[%c0_1, %c0_2] : memref<1x1024xf32, #tpu.memory_space<vmem>>, vector<1x1024xf32>
    %c0_3 = arith.constant 0 : index
    %c0_4 = arith.constant 0 : index
    %2 = vector.load %arg4[%c0_3, %c0_4] : memref<32x128xf32, #tpu.memory_space<vmem>>, vector<32x128xf32>
    %c0_5 = arith.constant 0 : index
    %c0_6 = arith.constant 0 : index
    %3 = vector.load %arg1[%c0_5, %c0_6] : memref<8x16xf32, #tpu.memory_space<vmem>>, vector<8x16xf32>
    %cst = arith.constant dense<0.000000e+00> : vector<8x1024xf32>
    %4 = tpu.matmul %3, %0, %cst {dimension_numbers = #tpu.dot_dimension_numbers<[1], [0], [0], [1], [0, 0, 1, 1], [], []>} : vector<8x16xf32>, vector<16x1024xf32>, vector<8x1024xf32> -> vector<8x1024xf32>
    %5 = vector.broadcast %1 : vector<1x1024xf32> to vector<8x1024xf32>
    %6 = arith.addf %4, %5 : vector<8x1024xf32>
    %cst_7 = arith.constant 0.000000e+00 : f32
    %7 = vector.broadcast %cst_7 : f32 to vector<8x32xf32>
    %cst_8 = arith.constant 0.000000e+00 : f32
    %8 = vector.broadcast %cst_8 : f32 to vector<8x32xf32>
    %9 = vector.extract_strided_slice %6 {offsets = [0, 0], sizes = [8, 128], strides = [1, 1]} : vector<8x1024xf32> to vector<8x128xf32>
    %cst_9 = arith.constant dense<0.000000e+00> : vector<8x128xf32>
    %10 = tpu.matmul %7, %2, %cst_9 {dimension_numbers = #tpu.dot_dimension_numbers<[1], [0], [0], [1], [0, 0, 1, 1], [], []>} : vector<8x32xf32>, vector<32x128xf32>, vector<8x128xf32> -> vector<8x128xf32>
    %11 = arith.addf %9, %10 : vector<8x128xf32>
    %12 = arith.negf %11 : vector<8x128xf32>
    %13 = math.exp %12 : vector<8x128xf32>
    %cst_10 = arith.constant 1.000000e+00 : f32
    %14 = vector.broadcast %cst_10 : f32 to vector<8x128xf32>
    %15 = arith.addf %14, %13 : vector<8x128xf32>
    %16 = arith.divf %14, %15 : vector<8x128xf32>
    %17 = math.tanh %11 : vector<8x128xf32>
    %18 = vector.extract_strided_slice %16 {offsets = [0, 0], sizes = [8, 32], strides = [1, 1]} : vector<8x128xf32> to vector<8x32xf32>
    %19 = vector.extract_strided_slice %16 {offsets = [0, 32], sizes = [8, 32], strides = [1, 1]} : vector<8x128xf32> to vector<8x32xf32>
    %20 = vector.extract_strided_slice %17 {offsets = [0, 64], sizes = [8, 32], strides = [1, 1]} : vector<8x128xf32> to vector<8x32xf32>
    %21 = vector.extract_strided_slice %16 {offsets = [0, 96], sizes = [8, 32], strides = [1, 1]} : vector<8x128xf32> to vector<8x32xf32>
    %22 = arith.mulf %19, %8 : vector<8x32xf32>
    %23 = arith.mulf %18, %20 : vector<8x32xf32>
    %24 = arith.addf %22, %23 : vector<8x32xf32>
    %25 = math.tanh %24 : vector<8x32xf32>
    %26 = arith.mulf %21, %25 : vector<8x32xf32>
    %27 = vector.extract_strided_slice %6 {offsets = [0, 128], sizes = [8, 128], strides = [1, 1]} : vector<8x1024xf32> to vector<8x128xf32>
    %cst_11 = arith.constant dense<0.000000e+00> : vector<8x128xf32>
    %28 = tpu.matmul %26, %2, %cst_11 {dimension_numbers = #tpu.dot_dimension_numbers<[1], [0], [0], [1], [0, 0, 1, 1], [], []>} : vector<8x32xf32>, vector<32x128xf32>, vector<8x128xf32> -> vector<8x128xf32>
    %29 = arith.addf %27, %28 : vector<8x128xf32>
    %30 = arith.negf %29 : vector<8x128xf32>
    %31 = math.exp %30 : vector<8x128xf32>
    %cst_12 = arith.constant 1.000000e+00 : f32
    %32 = vector.broadcast %cst_12 : f32 to vector<8x128xf32>
    %33 = arith.addf %32, %31 : vector<8x128xf32>
    %34 = arith.divf %32, %33 : vector<8x128xf32>
    %35 = math.tanh %29 : vector<8x128xf32>
    %36 = vector.extract_strided_slice %34 {offsets = [0, 0], sizes = [8, 32], strides = [1, 1]} : vector<8x128xf32> to vector<8x32xf32>
    %37 = vector.extract_strided_slice %34 {offsets = [0, 32], sizes = [8, 32], strides = [1, 1]} : vector<8x128xf32> to vector<8x32xf32>
    %38 = vector.extract_strided_slice %35 {offsets = [0, 64], sizes = [8, 32], strides = [1, 1]} : vector<8x128xf32> to vector<8x32xf32>
    %39 = vector.extract_strided_slice %34 {offsets = [0, 96], sizes = [8, 32], strides = [1, 1]} : vector<8x128xf32> to vector<8x32xf32>
    %40 = arith.mulf %37, %24 : vector<8x32xf32>
    %41 = arith.mulf %36, %38 : vector<8x32xf32>
    %42 = arith.addf %40, %41 : vector<8x32xf32>
    %43 = math.tanh %42 : vector<8x32xf32>
    %44 = arith.mulf %39, %43 : vector<8x32xf32>
    %45 = vector.extract_strided_slice %6 {offsets = [0, 256], sizes = [8, 128], strides = [1, 1]} : vector<8x1024xf32> to vector<8x128xf32>
    %cst_13 = arith.constant dense<0.000000e+00> : vector<8x128xf32>
    %46 = tpu.matmul %44, %2, %cst_13 {dimension_numbers = #tpu.dot_dimension_numbers<[1], [0], [0], [1], [0, 0, 1, 1], [], []>} : vector<8x32xf32>, vector<32x128xf32>, vector<8x128xf32> -> vector<8x128xf32>
    %47 = arith.addf %45, %46 : vector<8x128xf32>
    %48 = arith.negf %47 : vector<8x128xf32>
    %49 = math.exp %48 : vector<8x128xf32>
    %cst_14 = arith.constant 1.000000e+00 : f32
    %50 = vector.broadcast %cst_14 : f32 to vector<8x128xf32>
    %51 = arith.addf %50, %49 : vector<8x128xf32>
    %52 = arith.divf %50, %51 : vector<8x128xf32>
    %53 = math.tanh %47 : vector<8x128xf32>
    %54 = vector.extract_strided_slice %52 {offsets = [0, 0], sizes = [8, 32], strides = [1, 1]} : vector<8x128xf32> to vector<8x32xf32>
    %55 = vector.extract_strided_slice %52 {offsets = [0, 32], sizes = [8, 32], strides = [1, 1]} : vector<8x128xf32> to vector<8x32xf32>
    %56 = vector.extract_strided_slice %53 {offsets = [0, 64], sizes = [8, 32], strides = [1, 1]} : vector<8x128xf32> to vector<8x32xf32>
    %57 = vector.extract_strided_slice %52 {offsets = [0, 96], sizes = [8, 32], strides = [1, 1]} : vector<8x128xf32> to vector<8x32xf32>
    %58 = arith.mulf %55, %42 : vector<8x32xf32>
    %59 = arith.mulf %54, %56 : vector<8x32xf32>
    %60 = arith.addf %58, %59 : vector<8x32xf32>
    %61 = math.tanh %60 : vector<8x32xf32>
    %62 = arith.mulf %57, %61 : vector<8x32xf32>
    %63 = vector.extract_strided_slice %6 {offsets = [0, 384], sizes = [8, 128], strides = [1, 1]} : vector<8x1024xf32> to vector<8x128xf32>
    %cst_15 = arith.constant dense<0.000000e+00> : vector<8x128xf32>
    %64 = tpu.matmul %62, %2, %cst_15 {dimension_numbers = #tpu.dot_dimension_numbers<[1], [0], [0], [1], [0, 0, 1, 1], [], []>} : vector<8x32xf32>, vector<32x128xf32>, vector<8x128xf32> -> vector<8x128xf32>
    %65 = arith.addf %63, %64 : vector<8x128xf32>
    %66 = arith.negf %65 : vector<8x128xf32>
    %67 = math.exp %66 : vector<8x128xf32>
    %cst_16 = arith.constant 1.000000e+00 : f32
    %68 = vector.broadcast %cst_16 : f32 to vector<8x128xf32>
    %69 = arith.addf %68, %67 : vector<8x128xf32>
    %70 = arith.divf %68, %69 : vector<8x128xf32>
    %71 = math.tanh %65 : vector<8x128xf32>
    %72 = vector.extract_strided_slice %70 {offsets = [0, 0], sizes = [8, 32], strides = [1, 1]} : vector<8x128xf32> to vector<8x32xf32>
    %73 = vector.extract_strided_slice %70 {offsets = [0, 32], sizes = [8, 32], strides = [1, 1]} : vector<8x128xf32> to vector<8x32xf32>
    %74 = vector.extract_strided_slice %71 {offsets = [0, 64], sizes = [8, 32], strides = [1, 1]} : vector<8x128xf32> to vector<8x32xf32>
    %75 = vector.extract_strided_slice %70 {offsets = [0, 96], sizes = [8, 32], strides = [1, 1]} : vector<8x128xf32> to vector<8x32xf32>
    %76 = arith.mulf %73, %60 : vector<8x32xf32>
    %77 = arith.mulf %72, %74 : vector<8x32xf32>
    %78 = arith.addf %76, %77 : vector<8x32xf32>
    %79 = math.tanh %78 : vector<8x32xf32>
    %80 = arith.mulf %75, %79 : vector<8x32xf32>
    %81 = vector.extract_strided_slice %6 {offsets = [0, 512], sizes = [8, 128], strides = [1, 1]} : vector<8x1024xf32> to vector<8x128xf32>
    %cst_17 = arith.constant dense<0.000000e+00> : vector<8x128xf32>
    %82 = tpu.matmul %80, %2, %cst_17 {dimension_numbers = #tpu.dot_dimension_numbers<[1], [0], [0], [1], [0, 0, 1, 1], [], []>} : vector<8x32xf32>, vector<32x128xf32>, vector<8x128xf32> -> vector<8x128xf32>
    %83 = arith.addf %81, %82 : vector<8x128xf32>
    %84 = arith.negf %83 : vector<8x128xf32>
    %85 = math.exp %84 : vector<8x128xf32>
    %cst_18 = arith.constant 1.000000e+00 : f32
    %86 = vector.broadcast %cst_18 : f32 to vector<8x128xf32>
    %87 = arith.addf %86, %85 : vector<8x128xf32>
    %88 = arith.divf %86, %87 : vector<8x128xf32>
    %89 = math.tanh %83 : vector<8x128xf32>
    %90 = vector.extract_strided_slice %88 {offsets = [0, 0], sizes = [8, 32], strides = [1, 1]} : vector<8x128xf32> to vector<8x32xf32>
    %91 = vector.extract_strided_slice %88 {offsets = [0, 32], sizes = [8, 32], strides = [1, 1]} : vector<8x128xf32> to vector<8x32xf32>
    %92 = vector.extract_strided_slice %89 {offsets = [0, 64], sizes = [8, 32], strides = [1, 1]} : vector<8x128xf32> to vector<8x32xf32>
    %93 = vector.extract_strided_slice %88 {offsets = [0, 96], sizes = [8, 32], strides = [1, 1]} : vector<8x128xf32> to vector<8x32xf32>
    %94 = arith.mulf %91, %78 : vector<8x32xf32>
    %95 = arith.mulf %90, %92 : vector<8x32xf32>
    %96 = arith.addf %94, %95 : vector<8x32xf32>
    %97 = math.tanh %96 : vector<8x32xf32>
    %98 = arith.mulf %93, %97 : vector<8x32xf32>
    %99 = vector.extract_strided_slice %6 {offsets = [0, 640], sizes = [8, 128], strides = [1, 1]} : vector<8x1024xf32> to vector<8x128xf32>
    %cst_19 = arith.constant dense<0.000000e+00> : vector<8x128xf32>
    %100 = tpu.matmul %98, %2, %cst_19 {dimension_numbers = #tpu.dot_dimension_numbers<[1], [0], [0], [1], [0, 0, 1, 1], [], []>} : vector<8x32xf32>, vector<32x128xf32>, vector<8x128xf32> -> vector<8x128xf32>
    %101 = arith.addf %99, %100 : vector<8x128xf32>
    %102 = arith.negf %101 : vector<8x128xf32>
    %103 = math.exp %102 : vector<8x128xf32>
    %cst_20 = arith.constant 1.000000e+00 : f32
    %104 = vector.broadcast %cst_20 : f32 to vector<8x128xf32>
    %105 = arith.addf %104, %103 : vector<8x128xf32>
    %106 = arith.divf %104, %105 : vector<8x128xf32>
    %107 = math.tanh %101 : vector<8x128xf32>
    %108 = vector.extract_strided_slice %106 {offsets = [0, 0], sizes = [8, 32], strides = [1, 1]} : vector<8x128xf32> to vector<8x32xf32>
    %109 = vector.extract_strided_slice %106 {offsets = [0, 32], sizes = [8, 32], strides = [1, 1]} : vector<8x128xf32> to vector<8x32xf32>
    %110 = vector.extract_strided_slice %107 {offsets = [0, 64], sizes = [8, 32], strides = [1, 1]} : vector<8x128xf32> to vector<8x32xf32>
    %111 = vector.extract_strided_slice %106 {offsets = [0, 96], sizes = [8, 32], strides = [1, 1]} : vector<8x128xf32> to vector<8x32xf32>
    %112 = arith.mulf %109, %96 : vector<8x32xf32>
    %113 = arith.mulf %108, %110 : vector<8x32xf32>
    %114 = arith.addf %112, %113 : vector<8x32xf32>
    %115 = math.tanh %114 : vector<8x32xf32>
    %116 = arith.mulf %111, %115 : vector<8x32xf32>
    %117 = vector.extract_strided_slice %6 {offsets = [0, 768], sizes = [8, 128], strides = [1, 1]} : vector<8x1024xf32> to vector<8x128xf32>
    %cst_21 = arith.constant dense<0.000000e+00> : vector<8x128xf32>
    %118 = tpu.matmul %116, %2, %cst_21 {dimension_numbers = #tpu.dot_dimension_numbers<[1], [0], [0], [1], [0, 0, 1, 1], [], []>} : vector<8x32xf32>, vector<32x128xf32>, vector<8x128xf32> -> vector<8x128xf32>
    %119 = arith.addf %117, %118 : vector<8x128xf32>
    %120 = arith.negf %119 : vector<8x128xf32>
    %121 = math.exp %120 : vector<8x128xf32>
    %cst_22 = arith.constant 1.000000e+00 : f32
    %122 = vector.broadcast %cst_22 : f32 to vector<8x128xf32>
    %123 = arith.addf %122, %121 : vector<8x128xf32>
    %124 = arith.divf %122, %123 : vector<8x128xf32>
    %125 = math.tanh %119 : vector<8x128xf32>
    %126 = vector.extract_strided_slice %124 {offsets = [0, 0], sizes = [8, 32], strides = [1, 1]} : vector<8x128xf32> to vector<8x32xf32>
    %127 = vector.extract_strided_slice %124 {offsets = [0, 32], sizes = [8, 32], strides = [1, 1]} : vector<8x128xf32> to vector<8x32xf32>
    %128 = vector.extract_strided_slice %125 {offsets = [0, 64], sizes = [8, 32], strides = [1, 1]} : vector<8x128xf32> to vector<8x32xf32>
    %129 = vector.extract_strided_slice %124 {offsets = [0, 96], sizes = [8, 32], strides = [1, 1]} : vector<8x128xf32> to vector<8x32xf32>
    %130 = arith.mulf %127, %114 : vector<8x32xf32>
    %131 = arith.mulf %126, %128 : vector<8x32xf32>
    %132 = arith.addf %130, %131 : vector<8x32xf32>
    %133 = math.tanh %132 : vector<8x32xf32>
    %134 = arith.mulf %129, %133 : vector<8x32xf32>
    %135 = vector.extract_strided_slice %6 {offsets = [0, 896], sizes = [8, 128], strides = [1, 1]} : vector<8x1024xf32> to vector<8x128xf32>
    %cst_23 = arith.constant dense<0.000000e+00> : vector<8x128xf32>
    %136 = tpu.matmul %134, %2, %cst_23 {dimension_numbers = #tpu.dot_dimension_numbers<[1], [0], [0], [1], [0, 0, 1, 1], [], []>} : vector<8x32xf32>, vector<32x128xf32>, vector<8x128xf32> -> vector<8x128xf32>
    %137 = arith.addf %135, %136 : vector<8x128xf32>
    %138 = arith.negf %137 : vector<8x128xf32>
    %139 = math.exp %138 : vector<8x128xf32>
    %cst_24 = arith.constant 1.000000e+00 : f32
    %140 = vector.broadcast %cst_24 : f32 to vector<8x128xf32>
    %141 = arith.addf %140, %139 : vector<8x128xf32>
    %142 = arith.divf %140, %141 : vector<8x128xf32>
    %143 = math.tanh %137 : vector<8x128xf32>
    %144 = vector.extract_strided_slice %142 {offsets = [0, 0], sizes = [8, 32], strides = [1, 1]} : vector<8x128xf32> to vector<8x32xf32>
    %145 = vector.extract_strided_slice %142 {offsets = [0, 32], sizes = [8, 32], strides = [1, 1]} : vector<8x128xf32> to vector<8x32xf32>
    %146 = vector.extract_strided_slice %143 {offsets = [0, 64], sizes = [8, 32], strides = [1, 1]} : vector<8x128xf32> to vector<8x32xf32>
    %147 = vector.extract_strided_slice %142 {offsets = [0, 96], sizes = [8, 32], strides = [1, 1]} : vector<8x128xf32> to vector<8x32xf32>
    %148 = arith.mulf %145, %132 : vector<8x32xf32>
    %149 = arith.mulf %144, %146 : vector<8x32xf32>
    %150 = arith.addf %148, %149 : vector<8x32xf32>
    %151 = math.tanh %150 : vector<8x32xf32>
    %152 = arith.mulf %147, %151 : vector<8x32xf32>
    %c0_25 = arith.constant 0 : index
    %c0_26 = arith.constant 0 : index
    %153 = vector.load %arg5[%c0_25, %c0_26] : memref<8x32xf32, #tpu.memory_space<vmem>>, vector<8x32xf32>
    tpu.vector_store %arg5[%c0_25, %c0_26], %152 {strides = array<i32>} : memref<8x32xf32, #tpu.memory_space<vmem>>, vector<8x32xf32>,
    return
  }
  func.func @transform_0(%arg0: i32) -> (i32, i32) {
    %c0_i32 = arith.constant 0 : i32
    %c0_i32_0 = arith.constant 0 : i32
    return %arg0, %c0_i32 : i32, i32
  }
  func.func @transform_1(%arg0: i32) -> (i32, i32) {
    %c0_i32 = arith.constant 0 : i32
    %c0_i32_0 = arith.constant 0 : i32
    %c0_i32_1 = arith.constant 0 : i32
    return %c0_i32, %c0_i32_0 : i32, i32
  }
  func.func @transform_2(%arg0: i32) -> (i32, i32) {
    %c0_i32 = arith.constant 0 : i32
    %c0_i32_0 = arith.constant 0 : i32
    %c0_i32_1 = arith.constant 0 : i32
    return %c0_i32, %c0_i32_0 : i32, i32
  }
  func.func @transform_3(%arg0: i32) -> (i32, i32) {
    %c0_i32 = arith.constant 0 : i32
    %c0_i32_0 = arith.constant 0 : i32
    %c0_i32_1 = arith.constant 0 : i32
    return %c0_i32, %c0_i32_0 : i32, i32
  }
  func.func @transform_4(%arg0: i32) -> (i32, i32) {
    %c0_i32 = arith.constant 0 : i32
    %c0_i32_0 = arith.constant 0 : i32
    return %arg0, %c0_i32 : i32, i32
  }
}

</mosaic_0001>

<llo_original>
// kernel: tpu_custom_call.1
$region0: #{tpu_custom_call.1}
  #allocation0 [shape = 'u32[]', space=smem, size = 0x4, offset = 0x4, fixed_abs, tag = 'smem constant byte address 0x4 - core index']
  #allocation1 [shape = 'u32[144,128]{1,0:T(1,128)}', space=vmem, size = 0x12000, scoped, tag = 'internal scratch']
  %s0 = inlined_call_operand.hbm [shape: f32[8,16], index: 0, kind: input, shape index: {}]
  %s1 = inlined_call_operand.hbm [shape: f32[16,1024], index: 1, kind: input, shape index: {}]
  %s2 = inlined_call_operand.hbm [shape: f32[1,1024], index: 2, kind: input, shape index: {}]
  %s3 = inlined_call_operand.hbm [shape: f32[32,128], index: 3, kind: input, shape index: {}]
  %s4 = inlined_call_operand.hbm [shape: f32[8,32], index: 4, kind: output, shape index: {}]
  %s5 = sld [smem:[#allocation0]]
  $region42: #{tpu_custom_call.1} parent=0
    _
  %s7 = ssub.s32 1, %s5
  %s8 = scalar_select 0, %s7, %s5
  $region1: #{tpu_custom_call.1} parent=0
    #allocation2 [shape = 'u8[4096]{0}', space=vmem, size = 0x1000, scoped, tag = 'input window, operand 0, single buffered']
    #allocation3 [shape = 's32[1]{0}', space=sflag, size = 0x4, scoped, tag = 'scoped memory for tpu_custom_call.1']
    #allocation4 [shape = 's32[1]{0}', space=sflag, size = 0x4, scoped, tag = 'scoped memory for tpu_custom_call.1']
    #allocation5 [shape = 'u8[65536]{0}', space=vmem, size = 0x10000, scoped, tag = 'input window, operand 1, single buffered']
    #allocation6 [shape = 's32[1]{0}', space=sflag, size = 0x4, scoped, tag = 'scoped memory for tpu_custom_call.1']
    #allocation7 [shape = 'u8[4096]{0}', space=vmem, size = 0x1000, scoped, tag = 'input window, operand 2, single buffered']
    #allocation8 [shape = 'u8[16384]{0}', space=vmem, size = 0x4000, scoped, tag = 'input window, operand 3, single buffered']
    #allocation9 [shape = 's32[1]{0}', space=sflag, size = 0x4, scoped, tag = 'scoped memory for tpu_custom_call.1']
    #allocation10 [shape = 'u8[4096]{0}', space=vmem, size = 0x1000, scoped, tag = 'output window, operand 0, single buffered']
    %9 = vsyncpa [#allocation3], 0
    %10 = vsyncpa [#allocation6], 0
    %11 = vsyncpa [#allocation9], 0
    %12 = vsyncpa [#allocation4], 0
    // Predicated region
    $region2: #{tpu_custom_call.1} parent=1 // pred_check
      _
    $region3: #{tpu_custom_call.1} parent=1 // pred_check_branch
      %14 = sbr.rel (0) target = $region5
    $region4: #{tpu_custom_call.1} parent=1 // pred_region
      %s16 = ssub.s32 128, 128
      %17 = vsyncadd [#allocation3], %s16
      %s19 = sshll.u32 [#allocation2], 4
      %s20 = int_to_ptr.vmem [resolvable:$true] %s19
      %22 = dma.hbm_to_vmem [thread:$0]  %s0, 128, %s20, [#allocation3]
    $region5: #{tpu_custom_call.1} parent=1 // pred_fallthru
      _
    // Predicated region
    $region6: #{tpu_custom_call.1} parent=1 // pred_check
      _
    $region7: #{tpu_custom_call.1} parent=1 // pred_check_branch
      %24 = sbr.rel (0) target = $region9
    $region8: #{tpu_custom_call.1} parent=1 // pred_region
      %s26 = ssub.s32 2048, 2048
      %27 = vsyncadd [#allocation6], %s26
      %s28 = sshll.u32 [#allocation5], 4
      %s29 = int_to_ptr.vmem [resolvable:$true] %s28
      %34 = dma.hbm_to_vmem [thread:$0]  %s1, 2048, %s29, [#allocation6], 1024, 1024, 64
    $region9: #{tpu_custom_call.1} parent=1 // pred_fallthru
      _
    // Predicated region
    $region10: #{tpu_custom_call.1} parent=1 // pred_check
      _
    $region11: #{tpu_custom_call.1} parent=1 // pred_check_branch
      %36 = sbr.rel (0) target = $region13
    $region12: #{tpu_custom_call.1} parent=1 // pred_region
      %s38 = ssub.s32 128, 128
      %39 = vsyncadd [#allocation6], %s38
      %s41 = sshll.u32 [#allocation7], 4
      %s42 = int_to_ptr.vmem [resolvable:$true] %s41
      %44 = dma.hbm_to_vmem [thread:$0]  %s2, 128, %s42, [#allocation6]
    $region13: #{tpu_custom_call.1} parent=1 // pred_fallthru
      _
    // Predicated region
    $region14: #{tpu_custom_call.1} parent=1 // pred_check
      _
    $region15: #{tpu_custom_call.1} parent=1 // pred_check_branch
      %46 = sbr.rel (0) target = $region17
    $region16: #{tpu_custom_call.1} parent=1 // pred_region
      %s48 = ssub.s32 512, 512
      %49 = vsyncadd [#allocation9], %s48
      %s50 = sshll.u32 [#allocation8], 4
      %s51 = int_to_ptr.vmem [resolvable:$true] %s50
      %56 = dma.hbm_to_vmem [thread:$0]  %s3, 512, %s51, [#allocation9], 128, 128, 8
    $region17: #{tpu_custom_call.1} parent=1 // pred_fallthru
      _
    // Predicated region
    $region18: #{tpu_custom_call.1} parent=1 // pred_check
      _
    $region19: #{tpu_custom_call.1} parent=1 // pred_check_branch
      %58 = sbr.rel (0) target = $region21
    $region20: #{tpu_custom_call.1} parent=1 // pred_region
      %59 = dma.done [#allocation3], 128
    $region21: #{tpu_custom_call.1} parent=1 // pred_fallthru
      _
    // Predicated region
    $region22: #{tpu_custom_call.1} parent=1 // pred_check
      _
    $region23: #{tpu_custom_call.1} parent=1 // pred_check_branch
      %61 = sbr.rel (0) target = $region25
    $region24: #{tpu_custom_call.1} parent=1 // pred_region
      %62 = dma.done [#allocation6], 2048
    $region25: #{tpu_custom_call.1} parent=1 // pred_fallthru
      _
    // Predicated region
    $region26: #{tpu_custom_call.1} parent=1 // pred_check
      _
    $region27: #{tpu_custom_call.1} parent=1 // pred_check_branch
      %64 = sbr.rel (0) target = $region29
    $region28: #{tpu_custom_call.1} parent=1 // pred_region
      %65 = dma.done [#allocation6], 128
    $region29: #{tpu_custom_call.1} parent=1 // pred_fallthru
      _
    // Predicated region
    $region30: #{tpu_custom_call.1} parent=1 // pred_check
      _
    $region31: #{tpu_custom_call.1} parent=1 // pred_check_branch
      %67 = sbr.rel (0) target = $region33
    $region32: #{tpu_custom_call.1} parent=1 // pred_region
      %68 = dma.done [#allocation9], 512
    $region33: #{tpu_custom_call.1} parent=1 // pred_fallthru
      _
    %v69 = vld [vmem:[#allocation5] sm:$0xff]
    %v70 = vld [vmem:[#allocation5 + $0x8] sm:$0xff]
    %v71 = vld [vmem:[#allocation5 + $0x10] sm:$0xff]
    %v72 = vld [vmem:[#allocation5 + $0x18] sm:$0xff]
    %v73 = vld [vmem:[#allocation5 + $0x20] sm:$0xff]
    %v74 = vld [vmem:[#allocation5 + $0x28] sm:$0xff]
    %v75 = vld [vmem:[#allocation5 + $0x30] sm:$0xff]
    %v76 = vld [vmem:[#allocation5 + $0x38] sm:$0xff]
    %v77 = vld [vmem:[#allocation5 + $0x40] sm:$0xff]
    %v78 = vld [vmem:[#allocation5 + $0x48] sm:$0xff]
    %v79 = vld [vmem:[#allocation5 + $0x50] sm:$0xff]
    %v80 = vld [vmem:[#allocation5 + $0x58] sm:$0xff]
    %v81 = vld [vmem:[#allocation5 + $0x60] sm:$0xff]
    %v82 = vld [vmem:[#allocation5 + $0x68] sm:$0xff]
    %v83 = vld [vmem:[#allocation5 + $0x70] sm:$0xff]
    %v84 = vld [vmem:[#allocation5 + $0x78] sm:$0xff]
    %v85 = vld [vmem:[#allocation7] sm:$0xff]
    %v86 = vld [vmem:[#allocation8] sm:$0xff]
    %v87 = vld [vmem:[#allocation8 + $0x8] sm:$0xff]
    %v88 = vld [vmem:[#allocation8 + $0x10] sm:$0xff]
    %v89 = vld [vmem:[#allocation8 + $0x18] sm:$0xff]
    %v90 = vld [vmem:[#allocation2] sm:$0xff]
    %v92 = vlaneseq
    %v93 = vshrl.u32 %v92, 7
    %v94 = vsub.s32 0, %v93
    %v95 = vrot.slane %v85, %v94
    %v96 = vlaneseq
    %v97 = vshrl.u32 %v96, 7
    %v98 = vsub.s32 1, %v97
    %v99 = vrot.slane %v85, %v98
    %v100 = vlaneseq
    %v101 = vshrl.u32 %v100, 7
    %v102 = vsub.s32 2, %v101
    %v103 = vrot.slane %v85, %v102
    %v104 = vlaneseq
    %v105 = vshrl.u32 %v104, 7
    %v106 = vsub.s32 3, %v105
    %v107 = vrot.slane %v85, %v106
    %v108 = vlaneseq
    %v109 = vshrl.u32 %v108, 7
    %v110 = vsub.s32 4, %v109
    %v111 = vrot.slane %v85, %v110
    %v112 = vlaneseq
    %v113 = vshrl.u32 %v112, 7
    %v114 = vsub.s32 5, %v113
    %v115 = vrot.slane %v85, %v114
    %v116 = vlaneseq
    %v117 = vshrl.u32 %v116, 7
    %v118 = vsub.s32 6, %v117
    %v119 = vrot.slane %v85, %v118
    %v120 = vlaneseq
    %v121 = vshrl.u32 %v120, 7
    %v122 = vsub.s32 7, %v121
    %v123 = vrot.slane %v85, %v122
    %vm132 = vcmask 130048
    %v134 = vsel %vm132, %v90, 0
    %136 = vmatprep.subr.mxu0 0.0
    %137 = vmatpush1.msra.mxu0 0.0
    %138 = vmatprep.subr.mxu0 0.0
    %139 = vmatpush1.msra.mxu0 0.0
    %140 = vmatprep.subr.mxu0 0.0
    %141 = vmatpush1.msra.mxu0 0.0
    %142 = vmatprep.subr.mxu0 0.0
    %143 = vmatpush1.msra.mxu0 0.0
    %144 = vmatprep.subr.mxu0 0.0
    %145 = vmatpush1.msra.mxu0 0.0
    %146 = vmatprep.subr.mxu0 0.0
    %147 = vmatpush1.msra.mxu0 0.0
    %148 = vmatprep.subr.mxu0 0.0
    %149 = vmatpush1.msra.mxu0 0.0
    %150 = vmatprep.subr.mxu0 0.0
    %151 = vmatpush1.msra.mxu0 0.0
    %152 = vmatprep.subr.mxu0 0.0
    %153 = vmatpush1.msra.mxu0 0.0
    %154 = vmatprep.subr.mxu0 0.0
    %155 = vmatpush1.msra.mxu0 0.0
    %156 = vmatprep.subr.mxu0 0.0
    %157 = vmatpush1.msra.mxu0 0.0
    %158 = vmatprep.subr.mxu0 0.0
    %159 = vmatpush1.msra.mxu0 0.0
    %160 = vmatprep.subr.mxu0 0.0
    %161 = vmatpush1.msra.mxu0 0.0
    %162 = vmatprep.subr.mxu0 0.0
    %163 = vmatpush1.msra.mxu0 0.0
    %164 = vmatprep.subr.mxu0 %v78
    %165 = vmatpush1.msra.mxu0 %v77
    %166 = vmatprep.subr.mxu0 %v70
    %167 = vmatpush1.msra.mxu0 %v69
    %168 = vmatprep.subr.mxu0 0.0
    %169 = vmatpush2.msra.mxu0 0.0
    %170 = vmatprep.subr.mxu0 0.0
    %171 = vmatpush2.msra.mxu0 0.0
    %172 = vmatprep.subr.mxu0 0.0
    %173 = vmatpush2.msra.mxu0 0.0
    %174 = vmatprep.subr.mxu0 0.0
    %175 = vmatpush2.msra.mxu0 0.0
    %176 = vmatprep.subr.mxu0 0.0
    %177 = vmatpush2.msra.mxu0 0.0
    %178 = vmatprep.subr.mxu0 0.0
    %179 = vmatpush2.msra.mxu0 0.0
    %180 = vmatprep.subr.mxu0 0.0
    %181 = vmatpush2.msra.mxu0 0.0
    %182 = vmatprep.subr.mxu0 0.0
    %183 = vmatpush2.msra.mxu0 0.0
    %184 = vmatprep.subr.mxu0 0.0
    %185 = vmatpush2.msra.mxu0 0.0
    %186 = vmatprep.subr.mxu0 0.0
    %187 = vmatpush2.msra.mxu0 0.0
    %188 = vmatprep.subr.mxu0 0.0
    %189 = vmatpush2.msra.mxu0 0.0
    %190 = vmatprep.subr.mxu0 0.0
    %191 = vmatpush2.msra.mxu0 0.0
    %192 = vmatprep.subr.mxu0 0.0
    %193 = vmatpush2.msra.mxu0 0.0
    %194 = vmatprep.subr.mxu0 0.0
    %195 = vmatpush2.msra.mxu0 0.0
    %196 = vmatprep.subr.mxu0 0.0
    %197 = vmatpush2.msra.mxu0 0.0
    %198 = vmatprep.subr.mxu0 0.0
    %199 = vmatpush2.msra.mxu0 0.0
    %200 = vmatprep.mubr.f32.mxu0 0.0
    %201 = vmatmul.mubr.f32.gmra.mxu0 %v134
    %v202 = vpop.f32.mrf.mxu0
    %v203 = vadd.f32 %v95, %v202
    %v204 = vpop.f32.mrf.mxu0
    %v205 = vadd.f32 %v99, %v204
    %206 = vdwg.mxu0
    %207 = vmatprep.subr.mxu0 0.0
    %208 = vmatpush1.msra.mxu0 0.0
    %209 = vmatprep.subr.mxu0 0.0
    %210 = vmatpush1.msra.mxu0 0.0
    %211 = vmatprep.subr.mxu0 0.0
    %212 = vmatpush1.msra.mxu0 0.0
    %213 = vmatprep.subr.mxu0 0.0
    %214 = vmatpush1.msra.mxu0 0.0
    %215 = vmatprep.subr.mxu0 0.0
    %216 = vmatpush1.msra.mxu0 0.0
    %217 = vmatprep.subr.mxu0 0.0
    %218 = vmatpush1.msra.mxu0 0.0
    %219 = vmatprep.subr.mxu0 0.0
    %220 = vmatpush1.msra.mxu0 0.0
    %221 = vmatprep.subr.mxu0 0.0
    %222 = vmatpush1.msra.mxu0 0.0
    %223 = vmatprep.subr.mxu0 0.0
    %224 = vmatpush1.msra.mxu0 0.0
    %225 = vmatprep.subr.mxu0 0.0
    %226 = vmatpush1.msra.mxu0 0.0
    %227 = vmatprep.subr.mxu0 0.0
    %228 = vmatpush1.msra.mxu0 0.0
    %229 = vmatprep.subr.mxu0 0.0
    %230 = vmatpush1.msra.mxu0 0.0
    %231 = vmatprep.subr.mxu0 0.0
    %232 = vmatpush1.msra.mxu0 0.0
    %233 = vmatprep.subr.mxu0 0.0
    %234 = vmatpush1.msra.mxu0 0.0
    %235 = vmatprep.subr.mxu0 %v80
    %236 = vmatpush1.msra.mxu0 %v79
    %237 = vmatprep.subr.mxu0 %v72
    %238 = vmatpush1.msra.mxu0 %v71
    %239 = vmatprep.subr.mxu0 0.0
    %240 = vmatpush2.msra.mxu0 0.0
    %241 = vmatprep.subr.mxu0 0.0
    %242 = vmatpush2.msra.mxu0 0.0
    %243 = vmatprep.subr.mxu0 0.0
    %244 = vmatpush2.msra.mxu0 0.0
    %245 = vmatprep.subr.mxu0 0.0
    %246 = vmatpush2.msra.mxu0 0.0
    %247 = vmatprep.subr.mxu0 0.0
    %248 = vmatpush2.msra.mxu0 0.0
    %249 = vmatprep.subr.mxu0 0.0
    %250 = vmatpush2.msra.mxu0 0.0
    %251 = vmatprep.subr.mxu0 0.0
    %252 = vmatpush2.msra.mxu0 0.0
    %253 = vmatprep.subr.mxu0 0.0
    %254 = vmatpush2.msra.mxu0 0.0
    %255 = vmatprep.subr.mxu0 0.0
    %256 = vmatpush2.msra.mxu0 0.0
    %257 = vmatprep.subr.mxu0 0.0
    %258 = vmatpush2.msra.mxu0 0.0
    %259 = vmatprep.subr.mxu0 0.0
    %260 = vmatpush2.msra.mxu0 0.0
    %261 = vmatprep.subr.mxu0 0.0
    %262 = vmatpush2.msra.mxu0 0.0
    %263 = vmatprep.subr.mxu0 0.0
    %264 = vmatpush2.msra.mxu0 0.0
    %265 = vmatprep.subr.mxu0 0.0
    %266 = vmatpush2.msra.mxu0 0.0
    %267 = vmatprep.subr.mxu0 0.0
    %268 = vmatpush2.msra.mxu0 0.0
    %269 = vmatprep.subr.mxu0 0.0
    %270 = vmatpush2.msra.mxu0 0.0
    %271 = vmatprep.mubr.f32.mxu0 0.0
    %272 = vmatmul.mubr.f32.gmra.mxu0 %v134
    %v273 = vpop.f32.mrf.mxu0
    %v274 = vadd.f32 %v103, %v273
    %v275 = vpop.f32.mrf.mxu0
    %v276 = vadd.f32 %v107, %v275
    %277 = vdwg.mxu0
    %278 = vmatprep.subr.mxu0 0.0
    %279 = vmatpush1.msra.mxu0 0.0
    %280 = vmatprep.subr.mxu0 0.0
    %281 = vmatpush1.msra.mxu0 0.0
    %282 = vmatprep.subr.mxu0 0.0
    %283 = vmatpush1.msra.mxu0 0.0
    %284 = vmatprep.subr.mxu0 0.0
    %285 = vmatpush1.msra.mxu0 0.0
    %286 = vmatprep.subr.mxu0 0.0
    %287 = vmatpush1.msra.mxu0 0.0
    %288 = vmatprep.subr.mxu0 0.0
    %289 = vmatpush1.msra.mxu0 0.0
    %290 = vmatprep.subr.mxu0 0.0
    %291 = vmatpush1.msra.mxu0 0.0
    %292 = vmatprep.subr.mxu0 0.0
    %293 = vmatpush1.msra.mxu0 0.0
    %294 = vmatprep.subr.mxu0 0.0
    %295 = vmatpush1.msra.mxu0 0.0
    %296 = vmatprep.subr.mxu0 0.0
    %297 = vmatpush1.msra.mxu0 0.0
    %298 = vmatprep.subr.mxu0 0.0
    %299 = vmatpush1.msra.mxu0 0.0
    %300 = vmatprep.subr.mxu0 0.0
    %301 = vmatpush1.msra.mxu0 0.0
    %302 = vmatprep.subr.mxu0 0.0
    %303 = vmatpush1.msra.mxu0 0.0
    %304 = vmatprep.subr.mxu0 0.0
    %305 = vmatpush1.msra.mxu0 0.0
    %306 = vmatprep.subr.mxu0 %v82
    %307 = vmatpush1.msra.mxu0 %v81
    %308 = vmatprep.subr.mxu0 %v74
    %309 = vmatpush1.msra.mxu0 %v73
    %310 = vmatprep.subr.mxu0 0.0
    %311 = vmatpush2.msra.mxu0 0.0
    %312 = vmatprep.subr.mxu0 0.0
    %313 = vmatpush2.msra.mxu0 0.0
    %314 = vmatprep.subr.mxu0 0.0
    %315 = vmatpush2.msra.mxu0 0.0
    %316 = vmatprep.subr.mxu0 0.0
    %317 = vmatpush2.msra.mxu0 0.0
    %318 = vmatprep.subr.mxu0 0.0
    %319 = vmatpush2.msra.mxu0 0.0
    %320 = vmatprep.subr.mxu0 0.0
    %321 = vmatpush2.msra.mxu0 0.0
    %322 = vmatprep.subr.mxu0 0.0
    %323 = vmatpush2.msra.mxu0 0.0
    %324 = vmatprep.subr.mxu0 0.0
    %325 = vmatpush2.msra.mxu0 0.0
    %326 = vmatprep.subr.mxu0 0.0
    %327 = vmatpush2.msra.mxu0 0.0
    %328 = vmatprep.subr.mxu0 0.0
    %329 = vmatpush2.msra.mxu0 0.0
    %330 = vmatprep.subr.mxu0 0.0
    %331 = vmatpush2.msra.mxu0 0.0
    %332 = vmatprep.subr.mxu0 0.0
    %333 = vmatpush2.msra.mxu0 0.0
    %334 = vmatprep.subr.mxu0 0.0
    %335 = vmatpush2.msra.mxu0 0.0
    %336 = vmatprep.subr.mxu0 0.0
    %337 = vmatpush2.msra.mxu0 0.0
    %338 = vmatprep.subr.mxu0 0.0
    %339 = vmatpush2.msra.mxu0 0.0
    %340 = vmatprep.subr.mxu0 0.0
    %341 = vmatpush2.msra.mxu0 0.0
    %342 = vmatprep.mubr.f32.mxu0 0.0
    %343 = vmatmul.mubr.f32.gmra.mxu0 %v134
    %v344 = vpop.f32.mrf.mxu0
    %v345 = vadd.f32 %v111, %v344
    %v346 = vpop.f32.mrf.mxu0
    %v347 = vadd.f32 %v115, %v346
    %348 = vdwg.mxu0
    %349 = vmatprep.subr.mxu0 0.0
    %350 = vmatpush1.msra.mxu0 0.0
    %351 = vmatprep.subr.mxu0 0.0
    %352 = vmatpush1.msra.mxu0 0.0
    %353 = vmatprep.subr.mxu0 0.0
    %354 = vmatpush1.msra.mxu0 0.0
    %355 = vmatprep.subr.mxu0 0.0
    %356 = vmatpush1.msra.mxu0 0.0
    %357 = vmatprep.subr.mxu0 0.0
    %358 = vmatpush1.msra.mxu0 0.0
    %359 = vmatprep.subr.mxu0 0.0
    %360 = vmatpush1.msra.mxu0 0.0
    %361 = vmatprep.subr.mxu0 0.0
    %362 = vmatpush1.msra.mxu0 0.0
    %363 = vmatprep.subr.mxu0 0.0
    %364 = vmatpush1.msra.mxu0 0.0
    %365 = vmatprep.subr.mxu0 0.0
    %366 = vmatpush1.msra.mxu0 0.0
    %367 = vmatprep.subr.mxu0 0.0
    %368 = vmatpush1.msra.mxu0 0.0
    %369 = vmatprep.subr.mxu0 0.0
    %370 = vmatpush1.msra.mxu0 0.0
    %371 = vmatprep.subr.mxu0 0.0
    %372 = vmatpush1.msra.mxu0 0.0
    %373 = vmatprep.subr.mxu0 0.0
    %374 = vmatpush1.msra.mxu0 0.0
    %375 = vmatprep.subr.mxu0 0.0
    %376 = vmatpush1.msra.mxu0 0.0
    %377 = vmatprep.subr.mxu0 %v84
    %378 = vmatpush1.msra.mxu0 %v83
    %379 = vmatprep.subr.mxu0 %v76
    %380 = vmatpush1.msra.mxu0 %v75
    %381 = vmatprep.subr.mxu0 0.0
    %382 = vmatpush2.msra.mxu0 0.0
    %383 = vmatprep.subr.mxu0 0.0
    %384 = vmatpush2.msra.mxu0 0.0
    %385 = vmatprep.subr.mxu0 0.0
    %386 = vmatpush2.msra.mxu0 0.0
    %387 = vmatprep.subr.mxu0 0.0
    %388 = vmatpush2.msra.mxu0 0.0
    %389 = vmatprep.subr.mxu0 0.0
    %390 = vmatpush2.msra.mxu0 0.0
    %391 = vmatprep.subr.mxu0 0.0
    %392 = vmatpush2.msra.mxu0 0.0
    %393 = vmatprep.subr.mxu0 0.0
    %394 = vmatpush2.msra.mxu0 0.0
    %395 = vmatprep.subr.mxu0 0.0
    %396 = vmatpush2.msra.mxu0 0.0
    %397 = vmatprep.subr.mxu0 0.0
    %398 = vmatpush2.msra.mxu0 0.0
    %399 = vmatprep.subr.mxu0 0.0
    %400 = vmatpush2.msra.mxu0 0.0
    %401 = vmatprep.subr.mxu0 0.0
    %402 = vmatpush2.msra.mxu0 0.0
    %403 = vmatprep.subr.mxu0 0.0
    %404 = vmatpush2.msra.mxu0 0.0
    %405 = vmatprep.subr.mxu0 0.0
    %406 = vmatpush2.msra.mxu0 0.0
    %407 = vmatprep.subr.mxu0 0.0
    %408 = vmatpush2.msra.mxu0 0.0
    %409 = vmatprep.subr.mxu0 0.0
    %410 = vmatpush2.msra.mxu0 0.0
    %411 = vmatprep.subr.mxu0 0.0
    %412 = vmatpush2.msra.mxu0 0.0
    %413 = vmatprep.mubr.f32.mxu0 0.0
    %414 = vmatmul.mubr.f32.gmra.mxu0 %v134
    %v415 = vpop.f32.mrf.mxu0
    %v416 = vadd.f32 %v119, %v415
    %v417 = vpop.f32.mrf.mxu0
    %v418 = vadd.f32 %v123, %v417
    %419 = vdwg.mxu0
    %vm420 = vcmask 261120
    %v422 = vsel %vm420, 0.0, 0
    %424 = vmatprep.subr.mxu0 0.0
    %425 = vmatpush1.msra.mxu0 0.0
    %426 = vmatprep.subr.mxu0 0.0
    %427 = vmatpush1.msra.mxu0 0.0
    %428 = vmatprep.subr.mxu0 0.0
    %429 = vmatpush1.msra.mxu0 0.0
    %430 = vmatprep.subr.mxu0 0.0
    %431 = vmatpush1.msra.mxu0 0.0
    %432 = vmatprep.subr.mxu0 0.0
    %433 = vmatpush1.msra.mxu0 0.0
    %434 = vmatprep.subr.mxu0 0.0
    %435 = vmatpush1.msra.mxu0 0.0
    %436 = vmatprep.subr.mxu0 0.0
    %437 = vmatpush1.msra.mxu0 0.0
    %438 = vmatprep.subr.mxu0 0.0
    %439 = vmatpush1.msra.mxu0 0.0
    %440 = vmatprep.subr.mxu0 0.0
    %441 = vmatpush1.msra.mxu0 0.0
    %442 = vmatprep.subr.mxu0 0.0
    %443 = vmatpush1.msra.mxu0 0.0
    %444 = vmatprep.subr.mxu0 0.0
    %445 = vmatpush1.msra.mxu0 0.0
    %446 = vmatprep.subr.mxu0 0.0
    %447 = vmatpush1.msra.mxu0 0.0
    %448 = vmatprep.subr.mxu0 0.0
    %449 = vmatpush1.msra.mxu0 %v89
    %450 = vmatprep.subr.mxu0 0.0
    %451 = vmatpush1.msra.mxu0 %v88
    %452 = vmatprep.subr.mxu0 0.0
    %453 = vmatpush1.msra.mxu0 %v87
    %454 = vmatprep.subr.mxu0 0.0
    %455 = vmatpush1.msra.mxu0 %v86
    %456 = vmatprep.subr.mxu0 0.0
    %457 = vmatpush2.msra.mxu0 0.0
    %458 = vmatprep.subr.mxu0 0.0
    %459 = vmatpush2.msra.mxu0 0.0
    %460 = vmatprep.subr.mxu0 0.0
    %461 = vmatpush2.msra.mxu0 0.0
    %462 = vmatprep.subr.mxu0 0.0
    %463 = vmatpush2.msra.mxu0 0.0
    %464 = vmatprep.subr.mxu0 0.0
    %465 = vmatpush2.msra.mxu0 0.0
    %466 = vmatprep.subr.mxu0 0.0
    %467 = vmatpush2.msra.mxu0 0.0
    %468 = vmatprep.subr.mxu0 0.0
    %469 = vmatpush2.msra.mxu0 0.0
    %470 = vmatprep.subr.mxu0 0.0
    %471 = vmatpush2.msra.mxu0 0.0
    %472 = vmatprep.subr.mxu0 0.0
    %473 = vmatpush2.msra.mxu0 0.0
    %474 = vmatprep.subr.mxu0 0.0
    %475 = vmatpush2.msra.mxu0 0.0
    %476 = vmatprep.subr.mxu0 0.0
    %477 = vmatpush2.msra.mxu0 0.0
    %478 = vmatprep.subr.mxu0 0.0
    %479 = vmatpush2.msra.mxu0 0.0
    %480 = vmatprep.subr.mxu0 0.0
    %481 = vmatpush2.msra.mxu0 0.0
    %482 = vmatprep.subr.mxu0 0.0
    %483 = vmatpush2.msra.mxu0 0.0
    %484 = vmatprep.subr.mxu0 0.0
    %485 = vmatpush2.msra.mxu0 0.0
    %486 = vmatprep.subr.mxu0 0.0
    %487 = vmatpush2.msra.mxu0 0.0
    %488 = vmatprep.mubr.f32.mxu0 0.0
    %489 = vmatmul.mubr.f32.gmra.mxu0 %v422
    %v490 = vpop.f32.mrf.mxu0
    %v491 = vadd.f32 0.0, %v490
    %v492 = vpop.f32.mrf.mxu0
    %493 = vdwg.mxu0
    %v494 = vadd.f32 %v203, %v491
    %v495 = vxor.u32 %v494, 2147483648
    %v496 = vmul.f32 %v495, 1.442695
    %v497 = vpow.pop %v496
    %v498 = vadd.f32 %v497, 1.0
    %v499 = vrcp.pop %v498
    %v500 = vmul.f32 1.0, %v499
    %v501 = vtanh.pop %v494
    %v502 = vmul.f32 %v500, 0.0
    %504 = vrot.lane.b32.xlu0 %v501, 64
    %v505 = vpop.permute.xlu0 %504
    %v507 = vmul.f32 %v500, %v505
    %509 = vrot.lane.b32.xlu0 %v507, 32
    %v510 = vpop.permute.xlu0 %509
    %v512 = vadd.f32 %v502, %v510
    %v513 = vtanh.pop %v512
    %515 = vrot.lane.b32.xlu0 %v513, 64
    %v516 = vpop.permute.xlu0 %515
    %v518 = vmul.f32 %v500, %v516
    %520 = vrot.lane.b32.xlu0 %v518, 32
    %v521 = vpop.permute.xlu0 %520
    %v522 = vsel %vm420, %v521, 0
    %524 = vmatprep.subr.mxu0 0.0
    %525 = vmatpush1.msra.mxu0 0.0
    %526 = vmatprep.subr.mxu0 0.0
    %527 = vmatpush1.msra.mxu0 0.0
    %528 = vmatprep.subr.mxu0 0.0
    %529 = vmatpush1.msra.mxu0 0.0
    %530 = vmatprep.subr.mxu0 0.0
    %531 = vmatpush1.msra.mxu0 0.0
    %532 = vmatprep.subr.mxu0 0.0
    %533 = vmatpush1.msra.mxu0 0.0
    %534 = vmatprep.subr.mxu0 0.0
    %535 = vmatpush1.msra.mxu0 0.0
    %536 = vmatprep.subr.mxu0 0.0
    %537 = vmatpush1.msra.mxu0 0.0
    %538 = vmatprep.subr.mxu0 0.0
    %539 = vmatpush1.msra.mxu0 0.0
    %540 = vmatprep.subr.mxu0 0.0
    %541 = vmatpush1.msra.mxu0 0.0
    %542 = vmatprep.subr.mxu0 0.0
    %543 = vmatpush1.msra.mxu0 0.0
    %544 = vmatprep.subr.mxu0 0.0
    %545 = vmatpush1.msra.mxu0 0.0
    %546 = vmatprep.subr.mxu0 0.0
    %547 = vmatpush1.msra.mxu0 0.0
    %548 = vmatprep.subr.mxu0 0.0
    %549 = vmatpush1.msra.mxu0 %v89
    %550 = vmatprep.subr.mxu0 0.0
    %551 = vmatpush1.msra.mxu0 %v88
    %552 = vmatprep.subr.mxu0 0.0
    %553 = vmatpush1.msra.mxu0 %v87
    %554 = vmatprep.subr.mxu0 0.0
    %555 = vmatpush1.msra.mxu0 %v86
    %556 = vmatprep.subr.mxu0 0.0
    %557 = vmatpush2.msra.mxu0 0.0
    %558 = vmatprep.subr.mxu0 0.0
    %559 = vmatpush2.msra.mxu0 0.0
    %560 = vmatprep.subr.mxu0 0.0
    %561 = vmatpush2.msra.mxu0 0.0
    %562 = vmatprep.subr.mxu0 0.0
    %563 = vmatpush2.msra.mxu0 0.0
    %564 = vmatprep.subr.mxu0 0.0
    %565 = vmatpush2.msra.mxu0 0.0
    %566 = vmatprep.subr.mxu0 0.0
    %567 = vmatpush2.msra.mxu0 0.0
    %568 = vmatprep.subr.mxu0 0.0
    %569 = vmatpush2.msra.mxu0 0.0
    %570 = vmatprep.subr.mxu0 0.0
    %571 = vmatpush2.msra.mxu0 0.0
    %572 = vmatprep.subr.mxu0 0.0
    %573 = vmatpush2.msra.mxu0 0.0
    %574 = vmatprep.subr.mxu0 0.0
    %575 = vmatpush2.msra.mxu0 0.0
    %576 = vmatprep.subr.mxu0 0.0
    %577 = vmatpush2.msra.mxu0 0.0
    %578 = vmatprep.subr.mxu0 0.0
    %579 = vmatpush2.msra.mxu0 0.0
    %580 = vmatprep.subr.mxu0 0.0
    %581 = vmatpush2.msra.mxu0 0.0
    %582 = vmatprep.subr.mxu0 0.0
    %583 = vmatpush2.msra.mxu0 0.0
    %584 = vmatprep.subr.mxu0 0.0
    %585 = vmatpush2.msra.mxu0 0.0
    %586 = vmatprep.subr.mxu0 0.0
    %587 = vmatpush2.msra.mxu0 0.0
    %588 = vmatprep.mubr.f32.mxu0 0.0
    %589 = vmatmul.mubr.f32.gmra.mxu0 %v522
    %v590 = vpop.f32.mrf.mxu0
    %v591 = vadd.f32 0.0, %v590
    %v592 = vpop.f32.mrf.mxu0
    %593 = vdwg.mxu0
    %v594 = vadd.f32 %v205, %v591
    %v595 = vxor.u32 %v594, 2147483648
    %v596 = vmul.f32 %v595, 1.442695
    %v597 = vpow.pop %v596
    %v598 = vadd.f32 %v597, 1.0
    %v599 = vrcp.pop %v598
    %v600 = vmul.f32 1.0, %v599
    %v601 = vtanh.pop %v594
    %v602 = vmul.f32 %v600, %v512
    %604 = vrot.lane.b32.xlu0 %v601, 64
    %v605 = vpop.permute.xlu0 %604
    %v607 = vmul.f32 %v600, %v605
    %609 = vrot.lane.b32.xlu0 %v607, 32
    %v610 = vpop.permute.xlu0 %609
    %v612 = vadd.f32 %v602, %v610
    %v613 = vtanh.pop %v612
    %615 = vrot.lane.b32.xlu0 %v613, 64
    %v616 = vpop.permute.xlu0 %615
    %v618 = vmul.f32 %v600, %v616
    %620 = vrot.lane.b32.xlu0 %v618, 32
    %v621 = vpop.permute.xlu0 %620
    %v622 = vsel %vm420, %v621, 0
    %624 = vmatprep.subr.mxu0 0.0
    %625 = vmatpush1.msra.mxu0 0.0
    %626 = vmatprep.subr.mxu0 0.0
    %627 = vmatpush1.msra.mxu0 0.0
    %628 = vmatprep.subr.mxu0 0.0
    %629 = vmatpush1.msra.mxu0 0.0
    %630 = vmatprep.subr.mxu0 0.0
    %631 = vmatpush1.msra.mxu0 0.0
    %632 = vmatprep.subr.mxu0 0.0
    %633 = vmatpush1.msra.mxu0 0.0
    %634 = vmatprep.subr.mxu0 0.0
    %635 = vmatpush1.msra.mxu0 0.0
    %636 = vmatprep.subr.mxu0 0.0
    %637 = vmatpush1.msra.mxu0 0.0
    %638 = vmatprep.subr.mxu0 0.0
    %639 = vmatpush1.msra.mxu0 0.0
    %640 = vmatprep.subr.mxu0 0.0
    %641 = vmatpush1.msra.mxu0 0.0
    %642 = vmatprep.subr.mxu0 0.0
    %643 = vmatpush1.msra.mxu0 0.0
    %644 = vmatprep.subr.mxu0 0.0
    %645 = vmatpush1.msra.mxu0 0.0
    %646 = vmatprep.subr.mxu0 0.0
    %647 = vmatpush1.msra.mxu0 0.0
    %648 = vmatprep.subr.mxu0 0.0
    %649 = vmatpush1.msra.mxu0 %v89
    %650 = vmatprep.subr.mxu0 0.0
    %651 = vmatpush1.msra.mxu0 %v88
    %652 = vmatprep.subr.mxu0 0.0
    %653 = vmatpush1.msra.mxu0 %v87
    %654 = vmatprep.subr.mxu0 0.0
    %655 = vmatpush1.msra.mxu0 %v86
    %656 = vmatprep.subr.mxu0 0.0
    %657 = vmatpush2.msra.mxu0 0.0
    %658 = vmatprep.subr.mxu0 0.0
    %659 = vmatpush2.msra.mxu0 0.0
    %660 = vmatprep.subr.mxu0 0.0
    %661 = vmatpush2.msra.mxu0 0.0
    %662 = vmatprep.subr.mxu0 0.0
    %663 = vmatpush2.msra.mxu0 0.0
    %664 = vmatprep.subr.mxu0 0.0
    %665 = vmatpush2.msra.mxu0 0.0
    %666 = vmatprep.subr.mxu0 0.0
    %667 = vmatpush2.msra.mxu0 0.0
    %668 = vmatprep.subr.mxu0 0.0
    %669 = vmatpush2.msra.mxu0 0.0
    %670 = vmatprep.subr.mxu0 0.0
    %671 = vmatpush2.msra.mxu0 0.0
    %672 = vmatprep.subr.mxu0 0.0
    %673 = vmatpush2.msra.mxu0 0.0
    %674 = vmatprep.subr.mxu0 0.0
    %675 = vmatpush2.msra.mxu0 0.0
    %676 = vmatprep.subr.mxu0 0.0
    %677 = vmatpush2.msra.mxu0 0.0
    %678 = vmatprep.subr.mxu0 0.0
    %679 = vmatpush2.msra.mxu0 0.0
    %680 = vmatprep.subr.mxu0 0.0
    %681 = vmatpush2.msra.mxu0 0.0
    %682 = vmatprep.subr.mxu0 0.0
    %683 = vmatpush2.msra.mxu0 0.0
    %684 = vmatprep.subr.mxu0 0.0
    %685 = vmatpush2.msra.mxu0 0.0
    %686 = vmatprep.subr.mxu0 0.0
    %687 = vmatpush2.msra.mxu0 0.0
    %688 = vmatprep.mubr.f32.mxu0 0.0
    %689 = vmatmul.mubr.f32.gmra.mxu0 %v622
    %v690 = vpop.f32.mrf.mxu0
    %v691 = vadd.f32 0.0, %v690
    %v692 = vpop.f32.mrf.mxu0
    %693 = vdwg.mxu0
    %v694 = vadd.f32 %v274, %v691
    %v695 = vxor.u32 %v694, 2147483648
    %v696 = vmul.f32 %v695, 1.442695
    %v697 = vpow.pop %v696
    %v698 = vadd.f32 %v697, 1.0
    %v699 = vrcp.pop %v698
    %v700 = vmul.f32 1.0, %v699
    %v701 = vtanh.pop %v694
    %v702 = vmul.f32 %v700, %v612
    %704 = vrot.lane.b32.xlu0 %v701, 64
    %v705 = vpop.permute.xlu0 %704
    %v707 = vmul.f32 %v700, %v705
    %709 = vrot.lane.b32.xlu0 %v707, 32
    %v710 = vpop.permute.xlu0 %709
    %v712 = vadd.f32 %v702, %v710
    %v713 = vtanh.pop %v712
    %715 = vrot.lane.b32.xlu0 %v713, 64
    %v716 = vpop.permute.xlu0 %715
    %v718 = vmul.f32 %v700, %v716
    %720 = vrot.lane.b32.xlu0 %v718, 32
    %v721 = vpop.permute.xlu0 %720
    %v722 = vsel %vm420, %v721, 0
    %724 = vmatprep.subr.mxu0 0.0
    %725 = vmatpush1.msra.mxu0 0.0
    %726 = vmatprep.subr.mxu0 0.0
    %727 = vmatpush1.msra.mxu0 0.0
    %728 = vmatprep.subr.mxu0 0.0
    %729 = vmatpush1.msra.mxu0 0.0
    %730 = vmatprep.subr.mxu0 0.0
    %731 = vmatpush1.msra.mxu0 0.0
    %732 = vmatprep.subr.mxu0 0.0
    %733 = vmatpush1.msra.mxu0 0.0
    %734 = vmatprep.subr.mxu0 0.0
    %735 = vmatpush1.msra.mxu0 0.0
    %736 = vmatprep.subr.mxu0 0.0
    %737 = vmatpush1.msra.mxu0 0.0
    %738 = vmatprep.subr.mxu0 0.0
    %739 = vmatpush1.msra.mxu0 0.0
    %740 = vmatprep.subr.mxu0 0.0
    %741 = vmatpush1.msra.mxu0 0.0
    %742 = vmatprep.subr.mxu0 0.0
    %743 = vmatpush1.msra.mxu0 0.0
    %744 = vmatprep.subr.mxu0 0.0
    %745 = vmatpush1.msra.mxu0 0.0
    %746 = vmatprep.subr.mxu0 0.0
    %747 = vmatpush1.msra.mxu0 0.0
    %748 = vmatprep.subr.mxu0 0.0
    %749 = vmatpush1.msra.mxu0 %v89
    %750 = vmatprep.subr.mxu0 0.0
    %751 = vmatpush1.msra.mxu0 %v88
    %752 = vmatprep.subr.mxu0 0.0
    %753 = vmatpush1.msra.mxu0 %v87
    %754 = vmatprep.subr.mxu0 0.0
    %755 = vmatpush1.msra.mxu0 %v86
    %756 = vmatprep.subr.mxu0 0.0
    %757 = vmatpush2.msra.mxu0 0.0
    %758 = vmatprep.subr.mxu0 0.0
    %759 = vmatpush2.msra.mxu0 0.0
    %760 = vmatprep.subr.mxu0 0.0
    %761 = vmatpush2.msra.mxu0 0.0
    %762 = vmatprep.subr.mxu0 0.0
    %763 = vmatpush2.msra.mxu0 0.0
    %764 = vmatprep.subr.mxu0 0.0
    %765 = vmatpush2.msra.mxu0 0.0
    %766 = vmatprep.subr.mxu0 0.0
    %767 = vmatpush2.msra.mxu0 0.0
    %768 = vmatprep.subr.mxu0 0.0
    %769 = vmatpush2.msra.mxu0 0.0
    %770 = vmatprep.subr.mxu0 0.0
    %771 = vmatpush2.msra.mxu0 0.0
    %772 = vmatprep.subr.mxu0 0.0
    %773 = vmatpush2.msra.mxu0 0.0
    %774 = vmatprep.subr.mxu0 0.0
    %775 = vmatpush2.msra.mxu0 0.0
    %776 = vmatprep.subr.mxu0 0.0
    %777 = vmatpush2.msra.mxu0 0.0
    %778 = vmatprep.subr.mxu0 0.0
    %779 = vmatpush2.msra.mxu0 0.0
    %780 = vmatprep.subr.mxu0 0.0
    %781 = vmatpush2.msra.mxu0 0.0
    %782 = vmatprep.subr.mxu0 0.0
    %783 = vmatpush2.msra.mxu0 0.0
    %784 = vmatprep.subr.mxu0 0.0
    %785 = vmatpush2.msra.mxu0 0.0
    %786 = vmatprep.subr.mxu0 0.0
    %787 = vmatpush2.msra.mxu0 0.0
    %788 = vmatprep.mubr.f32.mxu0 0.0
    %789 = vmatmul.mubr.f32.gmra.mxu0 %v722
    %v790 = vpop.f32.mrf.mxu0
    %v791 = vadd.f32 0.0, %v790
    %v792 = vpop.f32.mrf.mxu0
    %793 = vdwg.mxu0
    %v794 = vadd.f32 %v276, %v791
    %v795 = vxor.u32 %v794, 2147483648
    %v796 = vmul.f32 %v795, 1.442695
    %v797 = vpow.pop %v796
    %v798 = vadd.f32 %v797, 1.0
    %v799 = vrcp.pop %v798
    %v800 = vmul.f32 1.0, %v799
    %v801 = vtanh.pop %v794
    %v802 = vmul.f32 %v800, %v712
    %804 = vrot.lane.b32.xlu0 %v801, 64
    %v805 = vpop.permute.xlu0 %804
    %v807 = vmul.f32 %v800, %v805
    %809 = vrot.lane.b32.xlu0 %v807, 32
    %v810 = vpop.permute.xlu0 %809
    %v812 = vadd.f32 %v802, %v810
    %v813 = vtanh.pop %v812
    %815 = vrot.lane.b32.xlu0 %v813, 64
    %v816 = vpop.permute.xlu0 %815
    %v818 = vmul.f32 %v800, %v816
    %820 = vrot.lane.b32.xlu0 %v818, 32
    %v821 = vpop.permute.xlu0 %820
    %v822 = vsel %vm420, %v821, 0
    %824 = vmatprep.subr.mxu0 0.0
    %825 = vmatpush1.msra.mxu0 0.0
    %826 = vmatprep.subr.mxu0 0.0
    %827 = vmatpush1.msra.mxu0 0.0
    %828 = vmatprep.subr.mxu0 0.0
    %829 = vmatpush1.msra.mxu0 0.0
    %830 = vmatprep.subr.mxu0 0.0
    %831 = vmatpush1.msra.mxu0 0.0
    %832 = vmatprep.subr.mxu0 0.0
    %833 = vmatpush1.msra.mxu0 0.0
    %834 = vmatprep.subr.mxu0 0.0
    %835 = vmatpush1.msra.mxu0 0.0
    %836 = vmatprep.subr.mxu0 0.0
    %837 = vmatpush1.msra.mxu0 0.0
    %838 = vmatprep.subr.mxu0 0.0
    %839 = vmatpush1.msra.mxu0 0.0
    %840 = vmatprep.subr.mxu0 0.0
    %841 = vmatpush1.msra.mxu0 0.0
    %842 = vmatprep.subr.mxu0 0.0
    %843 = vmatpush1.msra.mxu0 0.0
    %844 = vmatprep.subr.mxu0 0.0
    %845 = vmatpush1.msra.mxu0 0.0
    %846 = vmatprep.subr.mxu0 0.0
    %847 = vmatpush1.msra.mxu0 0.0
    %848 = vmatprep.subr.mxu0 0.0
    %849 = vmatpush1.msra.mxu0 %v89
    %850 = vmatprep.subr.mxu0 0.0
    %851 = vmatpush1.msra.mxu0 %v88
    %852 = vmatprep.subr.mxu0 0.0
    %853 = vmatpush1.msra.mxu0 %v87
    %854 = vmatprep.subr.mxu0 0.0
    %855 = vmatpush1.msra.mxu0 %v86
    %856 = vmatprep.subr.mxu0 0.0
    %857 = vmatpush2.msra.mxu0 0.0
    %858 = vmatprep.subr.mxu0 0.0
    %859 = vmatpush2.msra.mxu0 0.0
    %860 = vmatprep.subr.mxu0 0.0
    %861 = vmatpush2.msra.mxu0 0.0
    %862 = vmatprep.subr.mxu0 0.0
    %863 = vmatpush2.msra.mxu0 0.0
    %864 = vmatprep.subr.mxu0 0.0
    %865 = vmatpush2.msra.mxu0 0.0
    %866 = vmatprep.subr.mxu0 0.0
    %867 = vmatpush2.msra.mxu0 0.0
    %868 = vmatprep.subr.mxu0 0.0
    %869 = vmatpush2.msra.mxu0 0.0
    %870 = vmatprep.subr.mxu0 0.0
    %871 = vmatpush2.msra.mxu0 0.0
    %872 = vmatprep.subr.mxu0 0.0
    %873 = vmatpush2.msra.mxu0 0.0
    %874 = vmatprep.subr.mxu0 0.0
    %875 = vmatpush2.msra.mxu0 0.0
    %876 = vmatprep.subr.mxu0 0.0
    %877 = vmatpush2.msra.mxu0 0.0
    %878 = vmatprep.subr.mxu0 0.0
    %879 = vmatpush2.msra.mxu0 0.0
    %880 = vmatprep.subr.mxu0 0.0
    %881 = vmatpush2.msra.mxu0 0.0
    %882 = vmatprep.subr.mxu0 0.0
    %883 = vmatpush2.msra.mxu0 0.0
    %884 = vmatprep.subr.mxu0 0.0
    %885 = vmatpush2.msra.mxu0 0.0
    %886 = vmatprep.subr.mxu0 0.0
    %887 = vmatpush2.msra.mxu0 0.0
    %888 = vmatprep.mubr.f32.mxu0 0.0
    %889 = vmatmul.mubr.f32.gmra.mxu0 %v822
    %v890 = vpop.f32.mrf.mxu0
    %v891 = vadd.f32 0.0, %v890
    %v892 = vpop.f32.mrf.mxu0
    %893 = vdwg.mxu0
    %v894 = vadd.f32 %v345, %v891
    %v895 = vxor.u32 %v894, 2147483648
    %v896 = vmul.f32 %v895, 1.442695
    %v897 = vpow.pop %v896
    %v898 = vadd.f32 %v897, 1.0
    %v899 = vrcp.pop %v898
    %v900 = vmul.f32 1.0, %v899
    %v901 = vtanh.pop %v894
    %v902 = vmul.f32 %v900, %v812
    %904 = vrot.lane.b32.xlu0 %v901, 64
    %v905 = vpop.permute.xlu0 %904
    %v907 = vmul.f32 %v900, %v905
    %909 = vrot.lane.b32.xlu0 %v907, 32
    %v910 = vpop.permute.xlu0 %909
    %v912 = vadd.f32 %v902, %v910
    %v913 = vtanh.pop %v912
    %915 = vrot.lane.b32.xlu0 %v913, 64
    %v916 = vpop.permute.xlu0 %915
    %v918 = vmul.f32 %v900, %v916
    %920 = vrot.lane.b32.xlu0 %v918, 32
    %v921 = vpop.permute.xlu0 %920
    %v922 = vsel %vm420, %v921, 0
    %924 = vmatprep.subr.mxu0 0.0
    %925 = vmatpush1.msra.mxu0 0.0
    %926 = vmatprep.subr.mxu0 0.0
    %927 = vmatpush1.msra.mxu0 0.0
    %928 = vmatprep.subr.mxu0 0.0
    %929 = vmatpush1.msra.mxu0 0.0
    %930 = vmatprep.subr.mxu0 0.0
    %931 = vmatpush1.msra.mxu0 0.0
    %932 = vmatprep.subr.mxu0 0.0
    %933 = vmatpush1.msra.mxu0 0.0
    %934 = vmatprep.subr.mxu0 0.0
    %935 = vmatpush1.msra.mxu0 0.0
    %936 = vmatprep.subr.mxu0 0.0
    %937 = vmatpush1.msra.mxu0 0.0
    %938 = vmatprep.subr.mxu0 0.0
    %939 = vmatpush1.msra.mxu0 0.0
    %940 = vmatprep.subr.mxu0 0.0
    %941 = vmatpush1.msra.mxu0 0.0
    %942 = vmatprep.subr.mxu0 0.0
    %943 = vmatpush1.msra.mxu0 0.0
    %944 = vmatprep.subr.mxu0 0.0
    %945 = vmatpush1.msra.mxu0 0.0
    %946 = vmatprep.subr.mxu0 0.0
    %947 = vmatpush1.msra.mxu0 0.0
    %948 = vmatprep.subr.mxu0 0.0
    %949 = vmatpush1.msra.mxu0 %v89
    %950 = vmatprep.subr.mxu0 0.0
    %951 = vmatpush1.msra.mxu0 %v88
    %952 = vmatprep.subr.mxu0 0.0
    %953 = vmatpush1.msra.mxu0 %v87
    %954 = vmatprep.subr.mxu0 0.0
    %955 = vmatpush1.msra.mxu0 %v86
    %956 = vmatprep.subr.mxu0 0.0
    %957 = vmatpush2.msra.mxu0 0.0
    %958 = vmatprep.subr.mxu0 0.0
    %959 = vmatpush2.msra.mxu0 0.0
    %960 = vmatprep.subr.mxu0 0.0
    %961 = vmatpush2.msra.mxu0 0.0
    %962 = vmatprep.subr.mxu0 0.0
    %963 = vmatpush2.msra.mxu0 0.0
    %964 = vmatprep.subr.mxu0 0.0
    %965 = vmatpush2.msra.mxu0 0.0
    %966 = vmatprep.subr.mxu0 0.0
    %967 = vmatpush2.msra.mxu0 0.0
    %968 = vmatprep.subr.mxu0 0.0
    %969 = vmatpush2.msra.mxu0 0.0
    %970 = vmatprep.subr.mxu0 0.0
    %971 = vmatpush2.msra.mxu0 0.0
    %972 = vmatprep.subr.mxu0 0.0
    %973 = vmatpush2.msra.mxu0 0.0
    %974 = vmatprep.subr.mxu0 0.0
    %975 = vmatpush2.msra.mxu0 0.0
    %976 = vmatprep.subr.mxu0 0.0
    %977 = vmatpush2.msra.mxu0 0.0
    %978 = vmatprep.subr.mxu0 0.0
    %979 = vmatpush2.msra.mxu0 0.0
    %980 = vmatprep.subr.mxu0 0.0
    %981 = vmatpush2.msra.mxu0 0.0
    %982 = vmatprep.subr.mxu0 0.0
    %983 = vmatpush2.msra.mxu0 0.0
    %984 = vmatprep.subr.mxu0 0.0
    %985 = vmatpush2.msra.mxu0 0.0
    %986 = vmatprep.subr.mxu0 0.0
    %987 = vmatpush2.msra.mxu0 0.0
    %988 = vmatprep.mubr.f32.mxu0 0.0
    %989 = vmatmul.mubr.f32.gmra.mxu0 %v922
    %v990 = vpop.f32.mrf.mxu0
    %v991 = vadd.f32 0.0, %v990
    %v992 = vpop.f32.mrf.mxu0
    %993 = vdwg.mxu0
    %v994 = vadd.f32 %v347, %v991
    %v995 = vxor.u32 %v994, 2147483648
    %v996 = vmul.f32 %v995, 1.442695
    %v997 = vpow.pop %v996
    %v998 = vadd.f32 %v997, 1.0
    %v999 = vrcp.pop %v998
    %v1000 = vmul.f32 1.0, %v999
    %v1001 = vtanh.pop %v994
    %v1002 = vmul.f32 %v1000, %v912
    %1004 = vrot.lane.b32.xlu0 %v1001, 64
    %v1005 = vpop.permute.xlu0 %1004
    %v1007 = vmul.f32 %v1000, %v1005
    %1009 = vrot.lane.b32.xlu0 %v1007, 32
    %v1010 = vpop.permute.xlu0 %1009
    %v1012 = vadd.f32 %v1002, %v1010
    %v1013 = vtanh.pop %v1012
    %1015 = vrot.lane.b32.xlu0 %v1013, 64
    %v1016 = vpop.permute.xlu0 %1015
    %v1018 = vmul.f32 %v1000, %v1016
    %1020 = vrot.lane.b32.xlu0 %v1018, 32
    %v1021 = vpop.permute.xlu0 %1020
    %v1022 = vsel %vm420, %v1021, 0
    %1024 = vmatprep.subr.mxu0 0.0
    %1025 = vmatpush1.msra.mxu0 0.0
    %1026 = vmatprep.subr.mxu0 0.0
    %1027 = vmatpush1.msra.mxu0 0.0
    %1028 = vmatprep.subr.mxu0 0.0
    %1029 = vmatpush1.msra.mxu0 0.0
    %1030 = vmatprep.subr.mxu0 0.0
    %1031 = vmatpush1.msra.mxu0 0.0
    %1032 = vmatprep.subr.mxu0 0.0
    %1033 = vmatpush1.msra.mxu0 0.0
    %1034 = vmatprep.subr.mxu0 0.0
    %1035 = vmatpush1.msra.mxu0 0.0
    %1036 = vmatprep.subr.mxu0 0.0
    %1037 = vmatpush1.msra.mxu0 0.0
    %1038 = vmatprep.subr.mxu0 0.0
    %1039 = vmatpush1.msra.mxu0 0.0
    %1040 = vmatprep.subr.mxu0 0.0
    %1041 = vmatpush1.msra.mxu0 0.0
    %1042 = vmatprep.subr.mxu0 0.0
    %1043 = vmatpush1.msra.mxu0 0.0
    %1044 = vmatprep.subr.mxu0 0.0
    %1045 = vmatpush1.msra.mxu0 0.0
    %1046 = vmatprep.subr.mxu0 0.0
    %1047 = vmatpush1.msra.mxu0 0.0
    %1048 = vmatprep.subr.mxu0 0.0
    %1049 = vmatpush1.msra.mxu0 %v89
    %1050 = vmatprep.subr.mxu0 0.0
    %1051 = vmatpush1.msra.mxu0 %v88
    %1052 = vmatprep.subr.mxu0 0.0
    %1053 = vmatpush1.msra.mxu0 %v87
    %1054 = vmatprep.subr.mxu0 0.0
    %1055 = vmatpush1.msra.mxu0 %v86
    %1056 = vmatprep.subr.mxu0 0.0
    %1057 = vmatpush2.msra.mxu0 0.0
    %1058 = vmatprep.subr.mxu0 0.0
    %1059 = vmatpush2.msra.mxu0 0.0
    %1060 = vmatprep.subr.mxu0 0.0
    %1061 = vmatpush2.msra.mxu0 0.0
    %1062 = vmatprep.subr.mxu0 0.0
    %1063 = vmatpush2.msra.mxu0 0.0
    %1064 = vmatprep.subr.mxu0 0.0
    %1065 = vmatpush2.msra.mxu0 0.0
    %1066 = vmatprep.subr.mxu0 0.0
    %1067 = vmatpush2.msra.mxu0 0.0
    %1068 = vmatprep.subr.mxu0 0.0
    %1069 = vmatpush2.msra.mxu0 0.0
    %1070 = vmatprep.subr.mxu0 0.0
    %1071 = vmatpush2.msra.mxu0 0.0
    %1072 = vmatprep.subr.mxu0 0.0
    %1073 = vmatpush2.msra.mxu0 0.0
    %1074 = vmatprep.subr.mxu0 0.0
    %1075 = vmatpush2.msra.mxu0 0.0
    %1076 = vmatprep.subr.mxu0 0.0
    %1077 = vmatpush2.msra.mxu0 0.0
    %1078 = vmatprep.subr.mxu0 0.0
    %1079 = vmatpush2.msra.mxu0 0.0
    %1080 = vmatprep.subr.mxu0 0.0
    %1081 = vmatpush2.msra.mxu0 0.0
    %1082 = vmatprep.subr.mxu0 0.0
    %1083 = vmatpush2.msra.mxu0 0.0
    %1084 = vmatprep.subr.mxu0 0.0
    %1085 = vmatpush2.msra.mxu0 0.0
    %1086 = vmatprep.subr.mxu0 0.0
    %1087 = vmatpush2.msra.mxu0 0.0
    %1088 = vmatprep.mubr.f32.mxu0 0.0
    %1089 = vmatmul.mubr.f32.gmra.mxu0 %v1022
    %v1090 = vpop.f32.mrf.mxu0
    %v1091 = vadd.f32 0.0, %v1090
    %v1092 = vpop.f32.mrf.mxu0
    %1093 = vdwg.mxu0
    %v1094 = vadd.f32 %v416, %v1091
    %v1095 = vxor.u32 %v1094, 2147483648
    %v1096 = vmul.f32 %v1095, 1.442695
    %v1097 = vpow.pop %v1096
    %v1098 = vadd.f32 %v1097, 1.0
    %v1099 = vrcp.pop %v1098
    %v1100 = vmul.f32 1.0, %v1099
    %v1101 = vtanh.pop %v1094
    %v1102 = vmul.f32 %v1100, %v1012
    %1104 = vrot.lane.b32.xlu0 %v1101, 64
    %v1105 = vpop.permute.xlu0 %1104
    %v1107 = vmul.f32 %v1100, %v1105
    %1109 = vrot.lane.b32.xlu0 %v1107, 32
    %v1110 = vpop.permute.xlu0 %1109
    %v1112 = vadd.f32 %v1102, %v1110
    %v1113 = vtanh.pop %v1112
    %1115 = vrot.lane.b32.xlu0 %v1113, 64
    %v1116 = vpop.permute.xlu0 %1115
    %v1118 = vmul.f32 %v1100, %v1116
    %1120 = vrot.lane.b32.xlu0 %v1118, 32
    %v1121 = vpop.permute.xlu0 %1120
    %v1122 = vsel %vm420, %v1121, 0
    %1124 = vmatprep.subr.mxu0 0.0
    %1125 = vmatpush1.msra.mxu0 0.0
    %1126 = vmatprep.subr.mxu0 0.0
    %1127 = vmatpush1.msra.mxu0 0.0
    %1128 = vmatprep.subr.mxu0 0.0
    %1129 = vmatpush1.msra.mxu0 0.0
    %1130 = vmatprep.subr.mxu0 0.0
    %1131 = vmatpush1.msra.mxu0 0.0
    %1132 = vmatprep.subr.mxu0 0.0
    %1133 = vmatpush1.msra.mxu0 0.0
    %1134 = vmatprep.subr.mxu0 0.0
    %1135 = vmatpush1.msra.mxu0 0.0
    %1136 = vmatprep.subr.mxu0 0.0
    %1137 = vmatpush1.msra.mxu0 0.0
    %1138 = vmatprep.subr.mxu0 0.0
    %1139 = vmatpush1.msra.mxu0 0.0
    %1140 = vmatprep.subr.mxu0 0.0
    %1141 = vmatpush1.msra.mxu0 0.0
    %1142 = vmatprep.subr.mxu0 0.0
    %1143 = vmatpush1.msra.mxu0 0.0
    %1144 = vmatprep.subr.mxu0 0.0
    %1145 = vmatpush1.msra.mxu0 0.0
    %1146 = vmatprep.subr.mxu0 0.0
    %1147 = vmatpush1.msra.mxu0 0.0
    %1148 = vmatprep.subr.mxu0 0.0
    %1149 = vmatpush1.msra.mxu0 %v89
    %1150 = vmatprep.subr.mxu0 0.0
    %1151 = vmatpush1.msra.mxu0 %v88
    %1152 = vmatprep.subr.mxu0 0.0
    %1153 = vmatpush1.msra.mxu0 %v87
    %1154 = vmatprep.subr.mxu0 0.0
    %1155 = vmatpush1.msra.mxu0 %v86
    %1156 = vmatprep.subr.mxu0 0.0
    %1157 = vmatpush2.msra.mxu0 0.0
    %1158 = vmatprep.subr.mxu0 0.0
    %1159 = vmatpush2.msra.mxu0 0.0
    %1160 = vmatprep.subr.mxu0 0.0
    %1161 = vmatpush2.msra.mxu0 0.0
    %1162 = vmatprep.subr.mxu0 0.0
    %1163 = vmatpush2.msra.mxu0 0.0
    %1164 = vmatprep.subr.mxu0 0.0
    %1165 = vmatpush2.msra.mxu0 0.0
    %1166 = vmatprep.subr.mxu0 0.0
    %1167 = vmatpush2.msra.mxu0 0.0
    %1168 = vmatprep.subr.mxu0 0.0
    %1169 = vmatpush2.msra.mxu0 0.0
    %1170 = vmatprep.subr.mxu0 0.0
    %1171 = vmatpush2.msra.mxu0 0.0
    %1172 = vmatprep.subr.mxu0 0.0
    %1173 = vmatpush2.msra.mxu0 0.0
    %1174 = vmatprep.subr.mxu0 0.0
    %1175 = vmatpush2.msra.mxu0 0.0
    %1176 = vmatprep.subr.mxu0 0.0
    %1177 = vmatpush2.msra.mxu0 0.0
    %1178 = vmatprep.subr.mxu0 0.0
    %1179 = vmatpush2.msra.mxu0 0.0
    %1180 = vmatprep.subr.mxu0 0.0
    %1181 = vmatpush2.msra.mxu0 0.0
    %1182 = vmatprep.subr.mxu0 0.0
    %1183 = vmatpush2.msra.mxu0 0.0
    %1184 = vmatprep.subr.mxu0 0.0
    %1185 = vmatpush2.msra.mxu0 0.0
    %1186 = vmatprep.subr.mxu0 0.0
    %1187 = vmatpush2.msra.mxu0 0.0
    %1188 = vmatprep.mubr.f32.mxu0 0.0
    %1189 = vmatmul.mubr.f32.gmra.mxu0 %v1122
    %v1190 = vpop.f32.mrf.mxu0
    %v1191 = vadd.f32 0.0, %v1190
    %v1192 = vpop.f32.mrf.mxu0
    %1193 = vdwg.mxu0
    %v1194 = vadd.f32 %v418, %v1191
    %v1195 = vxor.u32 %v1194, 2147483648
    %v1196 = vmul.f32 %v1195, 1.442695
    %v1197 = vpow.pop %v1196
    %v1198 = vadd.f32 %v1197, 1.0
    %v1199 = vrcp.pop %v1198
    %v1200 = vmul.f32 1.0, %v1199
    %v1201 = vtanh.pop %v1194
    %v1202 = vmul.f32 %v1200, %v1112
    %1204 = vrot.lane.b32.xlu0 %v1201, 64
    %v1205 = vpop.permute.xlu0 %1204
    %v1207 = vmul.f32 %v1200, %v1205
    %1209 = vrot.lane.b32.xlu0 %v1207, 32
    %v1210 = vpop.permute.xlu0 %1209
    %v1212 = vadd.f32 %v1202, %v1210
    %v1213 = vtanh.pop %v1212
    %1215 = vrot.lane.b32.xlu0 %v1213, 64
    %v1216 = vpop.permute.xlu0 %1215
    %v1218 = vmul.f32 %v1200, %v1216
    %1220 = vrot.lane.b32.xlu0 %v1218, 32
    %v1221 = vpop.permute.xlu0 %1220
    %1223 = vst.msk [vmem:[#allocation10] sm:$0xff] %vm420, %v1221
    // Predicated region
    $region34: #{tpu_custom_call.1} parent=1 // pred_check
      _
    $region35: #{tpu_custom_call.1} parent=1 // pred_check_branch
      %1225 = sbr.rel (0) target = $region37
    $region36: #{tpu_custom_call.1} parent=1 // pred_region
      %s1227 = ssub.s32 128, 128
      %1228 = vsyncadd [#allocation4], %s1227
      %s1230 = sshll.u32 [#allocation10], 4
      %s1231 = int_to_ptr.vmem [resolvable:$true] %s1230
      %1233 = dma.vmem_to_hbm [thread:$0]  %s1231, 128, %s4, [#allocation4]
    $region37: #{tpu_custom_call.1} parent=1 // pred_fallthru
      _
    // Predicated region
    $region38: #{tpu_custom_call.1} parent=1 // pred_check
      _
    $region39: #{tpu_custom_call.1} parent=1 // pred_check_branch
      %1235 = sbr.rel (0) target = $region41
    $region40: #{tpu_custom_call.1} parent=1 // pred_region
      %1236 = dma.done [#allocation4], 128
    $region41: #{tpu_custom_call.1} parent=1 // pred_fallthru
      _
    %1237 = vsyncpa [#allocation3], 1
    %1238 = vsyncpa [#allocation6], 1
    %1239 = vsyncpa [#allocation9], 1
    %1240 = vsyncpa [#allocation4], 1

</llo_original>
